<compile_context>
chip_gen: v6e
topology: v6e:2x2x1
jax: 0.10.0
libtpu: 0.0.40
codegen_flags: <defaults>
</compile_context>

<pallas_src>
import math

import jax
import jax.numpy as jnp
from jax.experimental import pallas as pl
from jax.experimental.pallas import tpu as pltpu


def _vmem_capacity_bytes() -> int:
    """Physical per-core VMEM, generation aware; conservative 64 MiB fallback (v7x)."""
    try:
        return int(pltpu.get_tpu_info().vmem_capacity_bytes)
    except Exception:
        return 64 * 1024 * 1024


def _choose_batch_tile(batch: int, num_classes: int, itemsize: int, vmem_cap: int) -> int:
    # Live bytes per logit row while a tile is in flight:
    #   2 x input-dtype block (double-buffered DMA) + ~5 (tb, C) f32 temporaries
    #   (f32 cast, z, exp(z), class-iota/weights, w*z).
    per_row = num_classes * (2 * itemsize + 5 * 4)
    budget = int(vmem_cap * 0.6)               # headroom for compiler scratch / outputs
    tb = budget // per_row
    # Beyond ~12 MiB per logits block the DMA pipeline is already at roofline; bigger
    # tiles only burn VMEM (this matters on v7x's 64 MiB).
    tb = min(tb, (12 * 1024 * 1024) // max(1, num_classes * itemsize))
    if tb >= batch:
        return batch                            # single tile; full-dim block is always legal
    return max(8, (tb // 8) * 8)                # sublane (8) tiling rule when tb < batch


def _make_kernel(num_classes: int, smoothing: float, batch: int, tb: int,
                 tiles_per_core: int, needs_mask: bool):
    confidence = 1.0 - smoothing
    smooth_val = smoothing / (num_classes - 1)

    # Entropy term Sum_j t_j*log(t_j): compile-time constant (xlogy convention 0*log0 == 0,
    # matching PyTorch KLDivLoss).
    ent = 0.0
    if confidence > 0.0:
        ent += confidence * math.log(confidence)
    if smooth_val > 0.0:
        ent += (num_classes - 1) * smooth_val * math.log(smooth_val)

    def kernel(x_ref, tgt_ref, out_ref, acc_ref):
        i = pl.program_id(1)                     # tile index within this core's share

        @pl.when(i == 0)
        def _init():
            acc_ref[...] = jnp.zeros_like(acc_ref)

        x = x_ref[...].astype(jnp.float32)       # (tb, C) logits tile (upcast in-kernel)
        tgt = tgt_ref[...]                       # (tb, 1) int32 targets

        if needs_mask:
            p = pl.program_id(0)
            g = p * tiles_per_core + i           # unclamped global tile index
            row = jax.lax.broadcasted_iota(jnp.int32, (tb, 1), 0)
            valid = (g * tb + row) < batch       # (tb, 1) bool
            # Zero padded / out-of-range rows BEFORE any transcendental so no Inf/NaN
            # is ever produced from uninitialized data.
            x = jnp.where(valid, x, jnp.float32(0.0))

        # log-softmax pieces: one exp() pass over (tb, C) plus a (tb, 1) log().
        m = jnp.max(x, axis=-1, keepdims=True)                        # (tb, 1)
        z = x - m                                                     # (tb, C)
        lse = jnp.log(jnp.sum(jnp.exp(z), axis=-1, keepdims=True))    # (tb, 1)

        # Fused weighted reduction:  KL_row = ent + lse - Sum_j t_j * z_j
        # (lse coefficient is exactly 1 since Sum_j t_j == 1).
        cls = jax.lax.broadcasted_iota(jnp.int32, z.shape, 1)         # class ids on lanes
        w = jnp.where(cls == tgt, jnp.float32(confidence), jnp.float32(smooth_val))
        wsum = jnp.sum(w * z, axis=-1, keepdims=True)                 # (tb, 1)

        row_loss = jnp.float32(ent) + lse - wsum                      # (tb, 1)
        if needs_mask:
            row_loss = jnp.where(valid, row_loss, jnp.float32(0.0))

        acc_ref[...] += row_loss                 # vector-side loop-carried accumulator

        @pl.when(i == tiles_per_core - 1)
        def _finalize():
            partial = jnp.sum(acc_ref[...])      # this core's partial sum (scalar)
            out_ref[...] = jnp.broadcast_to(partial, out_ref.shape)   # lane-dense store

    return kernel


def label_smoothing_loss(x, target, *, size: int, smoothing: float, tile_rows=None):
    """x: (B, size) logits (fp32 or bf16), target: (B,) int class ids -> scalar loss."""
    assert x.ndim == 2 and x.shape[1] == size
    assert size >= 2, "smoothing / (size - 1) is undefined for size < 2"
    batch = x.shape[0]
    itemsize = jnp.dtype(x.dtype).itemsize
    vmem_cap = _vmem_capacity_bytes()

    tgt2d = target.astype(jnp.int32).reshape(batch, 1)

    tb = tile_rows if tile_rows is not None else _choose_batch_tile(batch, size, itemsize, vmem_cap)
    tb = min(tb, batch)
    assert tb == batch or tb % 8 == 0, "batch tile must be a multiple of 8 (or == batch)"
    num_tiles = pl.cdiv(batch, tb)

    # v7x / megacore: split the batch between TensorCores via a leading "parallel" axis.
    # On single-core chips (v5e/v6e) the axis simply runs sequentially (never slower).
    num_cores = min(2, num_tiles)
    tiles_per_core = pl.cdiv(num_tiles, num_cores)
    needs_mask = (num_cores * tiles_per_core * tb) != batch
    needs_clamp = (num_cores * tiles_per_core) > num_tiles

    if needs_clamp:
        def tile_index(p, i):
            # Clamp so the DMA block index never runs past the last (partial) block;
            # out-of-range tiles are fully masked inside the kernel.
            return (jnp.minimum(p * tiles_per_core + i, num_tiles - 1), 0)
    else:
        def tile_index(p, i):
            return (p * tiles_per_core + i, 0)

    # Generation-aware VMEM limit from the same live-bytes estimate used for tiling.
    est_bytes = (tb * size * (2 * itemsize + 5 * 4)      # input double-buffer + f32 temps
                 + 4 * tb * 4                            # targets block + (tb,1) scratch
                 + num_cores * 8 * 128 * 4               # partial-sum output
                 + (1 << 20))                            # misc compiler scratch
    vmem_limit = max(32 * 1024 * 1024, est_bytes + (8 << 20))
    vmem_limit = min(vmem_limit, int(vmem_cap * 0.9))

    out = pl.pallas_call(
        _make_kernel(size, smoothing, batch, tb, tiles_per_core, needs_mask),
        out_shape=jax.ShapeDtypeStruct((num_cores, 8, 128), jnp.float32),
        grid_spec=pltpu.PrefetchScalarGridSpec(
            num_scalar_prefetch=0,
            grid=(num_cores, tiles_per_core),
            in_specs=[
                pl.BlockSpec((tb, size), tile_index),    # logits tile (pipelined, x.dtype)
                pl.BlockSpec((tb, 1), tile_index),       # per-row target ids
            ],
            out_specs=pl.BlockSpec((1, 8, 128), lambda p, i: (p, 0, 0)),  # per-core partial
            scratch_shapes=[pltpu.VMEM((tb, 1), jnp.float32)],            # per-core accumulator
        ),
        compiler_params=pltpu.CompilerParams(
            dimension_semantics=("parallel", "arbitrary"),
            vmem_limit_bytes=vmem_limit,
        ),
    )(x, tgt2d)

    # Final cross-core reduction + batchmean in plain JAX.
    return jnp.sum(out[:, 0, 0]) / jnp.float32(batch)


def _reference(x, target, *, size: int, smoothing: float):
    """Pure-JAX reference matching the PyTorch module."""
    conf = 1.0 - smoothing
    sv = smoothing / (size - 1)
    logp = jax.nn.log_softmax(x.astype(jnp.float32), axis=-1)
    t = jnp.full(x.shape, sv, dtype=jnp.float32)
    t = t.at[jnp.arange(x.shape[0]), target].set(conf)
    kl = jnp.where(t > 0, t * (jnp.log(jnp.where(t > 0, t, 1.0)) - logp), 0.0)
    return jnp.sum(kl) / x.shape[0]


if __name__ == "__main__":
    # Module defaults: size=2 classes; config.smooth is not available -> use 0.1.
    SIZE = 2
    SMOOTHING = 0.1
    B = 8

    key = jax.random.PRNGKey(0)
    kx, kt = jax.random.split(key)
    x = jax.random.normal(kx, (B, SIZE), dtype=jnp.float32)
    target = jax.random.randint(kt, (B,), 0, SIZE, dtype=jnp.int32)

    loss = label_smoothing_loss(x, target, size=SIZE, smoothing=SMOOTHING)
    loss = jax.block_until_ready(loss)
    ref = _reference(x, target, size=SIZE, smoothing=SMOOTHING)
    assert jnp.allclose(loss, ref, rtol=1e-5, atol=1e-5), (loss, ref)

    # Multi-tile + dual-core split + partial-tile masking + clamped index_map path.
    B2, C2 = 20, 16
    kx2, kt2 = jax.random.split(jax.random.PRNGKey(0), 2)
    x2 = jax.random.normal(kx2, (B2, C2), dtype=jnp.float32)
    t2 = jax.random.randint(kt2, (B2,), 0, C2, dtype=jnp.int32)
    loss2 = label_smoothing_loss(x2, t2, size=C2, smoothing=SMOOTHING, tile_rows=8)
    loss2 = jax.block_until_ready(loss2)
    ref2 = _reference(x2, t2, size=C2, smoothing=SMOOTHING)
    assert jnp.allclose(loss2, ref2, rtol=1e-5, atol=1e-5), (loss2, ref2)

    # Exactly-divisible multi-tile path (no masking, no clamping), two cores.
    B3, C3 = 32, 16
    kx3, kt3 = jax.random.split(jax.random.PRNGKey(1), 2)
    x3 = jax.random.normal(kx3, (B3, C3), dtype=jnp.float32)
    t3 = jax.random.randint(kt3, (B3,), 0, C3, dtype=jnp.int32)
    loss3 = label_smoothing_loss(x3, t3, size=C3, smoothing=SMOOTHING, tile_rows=8)
    loss3 = jax.block_until_ready(loss3)
    ref3 = _reference(x3, t3, size=C3, smoothing=SMOOTHING)
    assert jnp.allclose(loss3, ref3, rtol=1e-5, atol=1e-5), (loss3, ref3)

    # bf16 logits DMA'd at 2 B/elem and upcast only inside the kernel.
    B4, C4 = 16, 128
    kx4, kt4 = jax.random.split(jax.random.PRNGKey(2), 2)
    x4 = jax.random.normal(kx4, (B4, C4), dtype=jnp.float32).astype(jnp.bfloat16)
    t4 = jax.random.randint(kt4, (B4,), 0, C4, dtype=jnp.int32)
    loss4 = label_smoothing_loss(x4, t4, size=C4, smoothing=SMOOTHING, tile_rows=8)
    loss4 = jax.block_until_ready(loss4)
    ref4 = _reference(x4, t4, size=C4, smoothing=SMOOTHING)
    assert jnp.allclose(loss4, ref4, rtol=1e-5, atol=1e-5), (loss4, ref4)

    print("KERNEL_OK")
</pallas_src>

<mosaic_0001>
module attributes {stable_mosaic.version = 11 : i64} {
  func.func @kernel(%arg0: i32, %arg1: i32, %arg2: memref<8x2xf32, #tpu.memory_space<vmem>>, %arg3: memref<8x1xi32, #tpu.memory_space<vmem>>, %arg4: memref<1x8x128xf32, #tpu.memory_space<vmem>>, %arg5: memref<8x1xf32, #tpu.memory_space<vmem>>) attributes {dimension_semantics = [#tpu.dimension_semantics<parallel>, #tpu.dimension_semantics<arbitrary>], iteration_bounds = array<i64: 1, 1>, scalar_prefetch = 0 : i64, scratch_operands = 1 : i64, tpu.core_type = #tpu.core_type<tc>, window_params = [{transform_indices = @transform_0, window_bounds = array<i64: 8, 2>}, {transform_indices = @transform_1, window_bounds = array<i64: 8, 1>}, {transform_indices = @transform_2, window_bounds = array<i64: 1, 8, 128>}]} {
    %c0_i32 = arith.constant 0 : i32
    %0 = arith.cmpi eq, %arg1, %c0_i32 : i32
    %1 = arith.extui %0 : i1 to i32
    %c0_i32_0 = arith.constant 0 : i32
    %2 = arith.cmpi ne, %1, %c0_i32_0 : i32
    scf.if %2 {
      %cst_15 = arith.constant 0.000000e+00 : f32
      %31 = vector.broadcast %cst_15 : f32 to vector<8x1xf32>
      %c0_16 = arith.constant 0 : index
      %c0_17 = arith.constant 0 : index
      %32 = vector.load %arg5[%c0_16, %c0_17] : memref<8x1xf32, #tpu.memory_space<vmem>>, vector<8x1xf32>
      tpu.vector_store %arg5[%c0_16, %c0_17], %31 {strides = array<i32>} : memref<8x1xf32, #tpu.memory_space<vmem>>, vector<8x1xf32>,
    } else {
    }
    %c0 = arith.constant 0 : index
    %c0_1 = arith.constant 0 : index
    %3 = vector.load %arg2[%c0, %c0_1] : memref<8x2xf32, #tpu.memory_space<vmem>>, vector<8x2xf32>
    %c0_2 = arith.constant 0 : index
    %c0_3 = arith.constant 0 : index
    %4 = vector.load %arg3[%c0_2, %c0_3] : memref<8x1xi32, #tpu.memory_space<vmem>>, vector<8x1xi32>
    %cst = arith.constant dense<0xFF800000> : vector<8xf32>
    %5 = vector.multi_reduction <maximumf>, %3, %cst [1] : vector<8x2xf32> to vector<8xf32>
    %6 = vector.shape_cast %5 : vector<8xf32> to vector<8x1xf32>
    %7 = vector.broadcast %6 : vector<8x1xf32> to vector<8x2xf32>
    %8 = arith.subf %3, %7 : vector<8x2xf32>
    %9 = math.exp %8 : vector<8x2xf32>
    %cst_4 = arith.constant dense<0.000000e+00> : vector<8xf32>
    %10 = vector.multi_reduction <add>, %9, %cst_4 [1] : vector<8x2xf32> to vector<8xf32>
    %11 = vector.shape_cast %10 : vector<8xf32> to vector<8x1xf32>
    %12 = math.log %11 : vector<8x1xf32>
    %13 = tpu.iota {dimensions = array<i32: 1>} : vector<8x2xi32>
    %14 = vector.broadcast %4 : vector<8x1xi32> to vector<8x2xi32>
    %15 = arith.cmpi eq, %13, %14 : vector<8x2xi32>
    %cst_5 = arith.constant 0.899999976 : f32
    %cst_6 = arith.constant 1.000000e-01 : f32
    %16 = vector.broadcast %cst_5 : f32 to vector<8x2xf32>
    %17 = vector.broadcast %cst_6 : f32 to vector<8x2xf32>
    %18 = arith.select %15, %16, %17 : vector<8x2xi1>, vector<8x2xf32>
    %19 = arith.mulf %18, %8 : vector<8x2xf32>
    %cst_7 = arith.constant dense<0.000000e+00> : vector<8xf32>
    %20 = vector.multi_reduction <add>, %19, %cst_7 [1] : vector<8x2xf32> to vector<8xf32>
    %21 = vector.shape_cast %20 : vector<8xf32> to vector<8x1xf32>
    %cst_8 = arith.constant -3.250830e-01 : f32
    %22 = vector.broadcast %cst_8 : f32 to vector<8x1xf32>
    %23 = arith.addf %22, %12 : vector<8x1xf32>
    %24 = arith.subf %23, %21 : vector<8x1xf32>
    %c0_9 = arith.constant 0 : index
    %c0_10 = arith.constant 0 : index
    %25 = vector.load %arg5[%c0_9, %c0_10] : memref<8x1xf32, #tpu.memory_space<vmem>>, vector<8x1xf32>
    %26 = arith.addf %25, %24 : vector<8x1xf32>
    %c0_11 = arith.constant 0 : index
    %c0_12 = arith.constant 0 : index
    %27 = vector.load %arg5[%c0_11, %c0_12] : memref<8x1xf32, #tpu.memory_space<vmem>>, vector<8x1xf32>
    tpu.vector_store %arg5[%c0_11, %c0_12], %26 {strides = array<i32>} : memref<8x1xf32, #tpu.memory_space<vmem>>, vector<8x1xf32>,
    %c0_i32_13 = arith.constant 0 : i32
    %28 = arith.cmpi eq, %arg1, %c0_i32_13 : i32
    %29 = arith.extui %28 : i1 to i32
    %c0_i32_14 = arith.constant 0 : i32
    %30 = arith.cmpi ne, %29, %c0_i32_14 : i32
    scf.if %30 {
      %c0_15 = arith.constant 0 : index
      %c0_16 = arith.constant 0 : index
      %31 = vector.load %arg5[%c0_15, %c0_16] : memref<8x1xf32, #tpu.memory_space<vmem>>, vector<8x1xf32>
      %32 = vector.shape_cast %31 : vector<8x1xf32> to vector<1x8x1xf32>
      %cst_17 = arith.constant dense<0.000000e+00> : vector<1xf32>
      %33 = vector.multi_reduction <add>, %32, %cst_17 [1, 2] : vector<1x8x1xf32> to vector<1xf32>
      %34 = vector.shape_cast %33 : vector<1xf32> to vector<1x1x1xf32>
      %35 = vector.extract %34[0, 0, 0] : f32 from vector<1x1x1xf32>
      %36 = vector.broadcast %35 : f32 to vector<1x8x128xf32>
      %c0_18 = arith.constant 0 : index
      %c0_19 = arith.constant 0 : index
      %c0_20 = arith.constant 0 : index
      %37 = vector.load %arg4[%c0_18, %c0_19, %c0_20] : memref<1x8x128xf32, #tpu.memory_space<vmem>>, vector<1x8x128xf32>
      tpu.vector_store %arg4[%c0_18, %c0_19, %c0_20], %36 {strides = array<i32>} : memref<1x8x128xf32, #tpu.memory_space<vmem>>, vector<1x8x128xf32>,
    } else {
    }
    return
  }
  func.func @transform_0(%arg0: i32, %arg1: i32) -> (i32, i32) {
    %c1_i32 = arith.constant 1 : i32
    %0 = arith.muli %arg0, %c1_i32 : i32
    %1 = arith.addi %0, %arg1 : i32
    %c0_i32 = arith.constant 0 : i32
    %c0_i32_0 = arith.constant 0 : i32
    return %1, %c0_i32 : i32, i32
  }
  func.func @transform_1(%arg0: i32, %arg1: i32) -> (i32, i32) {
    %c1_i32 = arith.constant 1 : i32
    %0 = arith.muli %arg0, %c1_i32 : i32
    %1 = arith.addi %0, %arg1 : i32
    %c0_i32 = arith.constant 0 : i32
    %c0_i32_0 = arith.constant 0 : i32
    return %1, %c0_i32 : i32, i32
  }
  func.func @transform_2(%arg0: i32, %arg1: i32) -> (i32, i32, i32) {
    %c0_i32 = arith.constant 0 : i32
    %c0_i32_0 = arith.constant 0 : i32
    %c0_i32_1 = arith.constant 0 : i32
    return %arg0, %c0_i32, %c0_i32_0 : i32, i32, i32
  }
}

</mosaic_0001>

<llo_original>
// kernel: tpu_custom_call.1
$region0: #{tpu_custom_call.1}
  #allocation0 [shape = 'u32[]', space=smem, size = 0x4, offset = 0x4, fixed_abs, tag = 'smem constant byte address 0x4 - core index']
  #allocation1 [shape = 'u32[144,128]{1,0:T(1,128)}', space=vmem, size = 0x12000, scoped, tag = 'internal scratch']
  #allocation2 [shape = 'f32[8,1]{1,0:T(8,128)}', space=vmem, size = 0x1000, scoped, tag = 'scratch operand']
  %s0 = inlined_call_operand.vmem [shape: f32[8,2], index: 0, kind: input, shape index: {}]
  %s1 = inlined_call_operand.vmem [shape: s32[8,1], index: 1, kind: input, shape index: {}]
  %s2 = inlined_call_operand.hbm [shape: f32[1,8,128], index: 2, kind: output, shape index: {}]
  %s3 = sld [smem:[#allocation0]]
  $region26: #{tpu_custom_call.1} parent=0
    _
  %s5 = ssub.s32 1, %s3
  %s6 = scalar_select 0, %s5, %s3
  $region1: #{tpu_custom_call.1} parent=0
    #allocation3 [shape = 'u8[4096]{0}', space=vmem, size = 0x1000, scoped, tag = 'output window, operand 0, single buffered']
    #allocation4 [shape = 's32[1]{0}', space=sflag, size = 0x4, scoped, tag = 'scoped memory for tpu_custom_call.1']
    %7 = vsyncpa [#allocation4], 0
    // Predicated region
    $region2: #{tpu_custom_call.1} parent=1 // pred_check
      _
    $region3: #{tpu_custom_call.1} parent=1 // pred_check_branch
      %9 = sbr.rel (0) target = $region5
    $region4: #{tpu_custom_call.1} parent=1 // pred_region
      %s10 = sadd.s32 0, 0
      %p11 = scmp.lt.s32.totalorder %s10, 0
      %s12 = scalar_select %p11, %s10, 0
      %s13 = smul.addr %s12, 8
      %s14 = scalar_lea.vmem %s0, %s13
      %s15 = sadd.s32 0, 0
    $region5: #{tpu_custom_call.1} parent=1 // pred_fallthru
      _
    // Predicated region
    $region6: #{tpu_custom_call.1} parent=1 // pred_check
      _
    $region7: #{tpu_custom_call.1} parent=1 // pred_check_branch
      %17 = sbr.rel (0) target = $region9
    $region8: #{tpu_custom_call.1} parent=1 // pred_region
      %s18 = sadd.s32 0, 0
      %p19 = scmp.lt.s32.totalorder %s18, 0
      %s20 = scalar_select %p19, %s18, 0
      %s21 = smul.addr %s20, 8
      %s22 = scalar_lea.vmem %s1, %s21
      %s23 = sadd.s32 0, 0
    $region9: #{tpu_custom_call.1} parent=1 // pred_fallthru
      _
    %s24 = sadd.s32 0, 0
    %p25 = scmp.lt.s32.totalorder %s24, 0
    %s26 = scalar_select %p25, %s24, 0
    %s27 = smul.addr %s26, 8
    %s28 = scalar_lea.vmem %s0, %s27
    %s29 = sadd.s32 0, 0
    %p30 = scmp.lt.s32.totalorder %s29, 0
    %s31 = scalar_select %p30, %s29, 0
    %s32 = smul.addr %s31, 8
    %s33 = scalar_lea.vmem %s1, %s32
    %s34 = sadd.s32 0, 0
    %p35 = scmp.lt.s32.totalorder %s34, 0
    %s36 = scalar_select %p35, %s34, 0
    %s37 = smul.addr %s36, 8
    %s38 = scalar_lea.vmem %s0, %s37
    %s39 = sadd.s32 0, 0
    %s40 = sadd.s32 0, 0
    %p41 = scmp.lt.s32.totalorder %s40, 0
    %s42 = scalar_select %p41, %s40, 0
    %s43 = smul.addr %s42, 8
    %s44 = scalar_lea.vmem %s1, %s43
    %s45 = sadd.s32 0, 0
    %p46 = scmp.eq.s32.totalorder 0, 0
    // Predicated region
    $region10: #{tpu_custom_call.1} parent=1 // pred_check
      %p47 = pneg %p46
    $region11: #{tpu_custom_call.1} parent=1 // pred_check_branch
      %49 = sbr.rel (%p47) target = $region13
    $region12: #{tpu_custom_call.1} parent=1 // pred_region
      %vm50 = vcmask 7168
      %51 = vst.msk [vmem:[#allocation2] sm:$0xff] %vm50, 0.0
    $region13: #{tpu_custom_call.1} parent=1 // pred_fallthru
      _
    %v52 = vld [vmem:[%s38] sm:$0xff]
    %v53 = vld [vmem:[%s44] sm:$0xff]
    %vm54 = vcmask 15360
    %v55 = vsel %vm54, %v52, -inf
    %56 = vmax.xlane.f32.xlu0 %v55
    %v57 = vpop.xlane.xlu0 %56
    %v58 = vsub.f32 %v52, %v57
    %v59 = vmul.f32 %v58, 1.442695
    %v60 = vpow.pop %v59
    %v61 = vsel %vm54, %v60, 0.0
    %62 = vadd.xlane.f32.xlu0 %v61
    %v63 = vpop.xlane.xlu0 %62
    %v64 = vlog2.pop %v63
    %v65 = vmul.f32 %v64, 0.6931472
    %v66 = vlaneseq
    %v67 = vand.u32 %v66, 127
    %68 = vset.pattern.permute.xlu0 0
    %69 = vperm.xlu0 %68, %v53
    %v70 = vpop.permute.xlu0 %69
    %vm71 = vcmp.eq.s32.totalorder %v67, %v70
    %v72 = vsel %vm71, 0.9, 0.1
    %v73 = vmul.f32 %v72, %v58
    %v74 = vsel %vm54, %v73, 0.0
    %75 = vadd.xlane.f32.xlu0 %v74
    %v76 = vpop.xlane.xlu0 %75
    %v77 = vadd.f32 %v65, -0.325083
    %v78 = vsub.f32 %v77, %v76
    %v79 = vld [vmem:[#allocation2] sm:$0xff]
    %v80 = vadd.f32 %v79, %v78
    %vm81 = vcmask 7168
    %82 = vst.msk [vmem:[#allocation2] sm:$0xff] %vm81, %v80
    // Predicated region
    $region14: #{tpu_custom_call.1} parent=1 // pred_check
      %p83 = pneg %p46
    $region15: #{tpu_custom_call.1} parent=1 // pred_check_branch
      %85 = sbr.rel (%p83) target = $region17
    $region16: #{tpu_custom_call.1} parent=1 // pred_region
      %v86 = vld [vmem:[#allocation2] sm:$0xff]
      %v87 = vsel %vm81, %v86, 0.0
      %88 = vadd.xlane.f32.xlu0 %v87
      %v89 = vpop.xlane.xlu0 %88
      %v90 = vrot.slane %v89, 4
      %v91 = vadd.f32 %v89, %v90
      %v92 = vrot.slane %v91, 2
      %v93 = vadd.f32 %v91, %v92
      %v94 = vrot.slane %v93, 1
      %v95 = vadd.f32 %v93, %v94
      %s96 = vtos %v95
      %v97 = vstv %s96
      %98 = vst [vmem:[#allocation3] sm:$0xff] %v97
    $region17: #{tpu_custom_call.1} parent=1 // pred_fallthru
      _
    // Predicated region
    $region18: #{tpu_custom_call.1} parent=1 // pred_check
      _
    $region19: #{tpu_custom_call.1} parent=1 // pred_check_branch
      %100 = sbr.rel (0) target = $region21
    $region20: #{tpu_custom_call.1} parent=1 // pred_region
      %s102 = ssub.s32 128, 128
      %103 = vsyncadd [#allocation4], %s102
      %s105 = sshll.u32 [#allocation3], 4
      %s106 = int_to_ptr.vmem [resolvable:$true] %s105
      %108 = dma.vmem_to_hbm [thread:$0]  %s106, 128, %s2, [#allocation4]
    $region21: #{tpu_custom_call.1} parent=1 // pred_fallthru
      _
    // Predicated region
    $region22: #{tpu_custom_call.1} parent=1 // pred_check
      _
    $region23: #{tpu_custom_call.1} parent=1 // pred_check_branch
      %110 = sbr.rel (0) target = $region25
    $region24: #{tpu_custom_call.1} parent=1 // pred_region
      %111 = dma.done [#allocation4], 128
    $region25: #{tpu_custom_call.1} parent=1 // pred_fallthru
      _
    %112 = vsyncpa [#allocation4], 1

</llo_original>
